<compile_context>
chip_gen: v6e
topology: v6e:2x2x1
jax: 0.10.0
libtpu: 0.0.40
codegen_flags: <defaults>
</compile_context>

<pallas_src>
import math

import jax
import jax.numpy as jnp
from jax.experimental import pallas as pl
from jax.experimental.pallas import tpu as pltpu


def _round_up(x: int, m: int) -> int:
    return ((x + m - 1) // m) * m


def _triplet_dist_kernel(xm_ref, xt_ref, tcol_ref, trow_ref,
                         ap_ref, an_ref, acc_ap, acc_an):
    """Grid = (row blocks, col blocks); column axis is the reduction axis."""
    c = pl.program_id(1)

    @pl.when(c == 0)
    def _():
        acc_ap[...] = jnp.full_like(acc_ap, -jnp.inf)   # running masked dist
        acc_an[...] = jnp.full_like(acc_an, jnp.inf)

    # One (TM,Fpad)x(Fpad,TN) bf16 MXU call -> f32 accumulator tile.
    dist = jnp.dot(xm_ref[...], xt_ref[...],
                   preferred_element_type=jnp.float32)          # (TM, TN) f32

    tcol = tcol_ref[...]              # (TM, 1) int32 (row targets)
    trow = trow_ref[...]              # (1, TN) int32, -1 on padded columns

    same = tcol == trow                                         # (TM, TN)
    diff = jnp.logical_and(trow >= 0, jnp.logical_not(same))

    # Elementwise fold only -- VPU work that hides under the matmul.
    acc_ap[...] = jnp.maximum(acc_ap[...],
                              jnp.where(same, dist, -jnp.inf))
    acc_an[...] = jnp.minimum(acc_an[...],
                              jnp.where(diff, dist, jnp.inf))

    # Single cross-lane reduce + (TM,1) store per row block.
    @pl.when(c == pl.num_programs(1) - 1)
    def _():
        ap_ref[...] = jnp.max(acc_ap[...], axis=1, keepdims=True)
        an_ref[...] = jnp.min(acc_an[...], axis=1, keepdims=True)


def metric_triplet_loss(inputs, targets, M, margin=0.0, *, tm=512, tn=256):
    """inputs: (N, F) float, targets: (N,) int (non-negative labels), M: (F, F)."""
    n, f = inputs.shape
    fpad = _round_up(f, 128)

    # Clamp tiles to the (padded) problem; keep >=2 row blocks when possible
    # so the "parallel" row axis can split across 2 TensorCores (v7x).
    n128 = _round_up(n, 128)
    tm = max(128, min(tm, n128))
    tn = max(128, min(tn, n128))
    if n128 > 128 and n128 // tm < 2:
        tm = max(128, _round_up(-(-n // 2), 128))

    # Pad rows/columns independently (no lcm blow-up when TM != TN).
    npad_r = _round_up(n, tm)
    npad_c = _round_up(n, tn)

    xb = inputs.astype(jnp.bfloat16)
    mb = M.astype(jnp.bfloat16)

    # Hoisted XM = X @ M (tiny N x F x F matmul in XLA), cast to bf16 for the MXU.
    xmf = jnp.dot(xb, mb, preferred_element_type=jnp.float32).astype(jnp.bfloat16)

    xm = jnp.zeros((npad_r, fpad), jnp.bfloat16).at[:n, :f].set(xmf)
    xt = jnp.zeros((fpad, npad_c), jnp.bfloat16).at[:f, :n].set(xb.T)

    # Targets as column (rows of the tile) and row (columns of the tile).
    # Padded columns get -1, which never matches a (non-negative) class label,
    # so they can win neither the same-class max nor the diff-class min.
    t = targets.astype(jnp.int32)
    tcol = jnp.zeros((npad_r, 1), jnp.int32).at[:n, 0].set(t)
    trow = jnp.full((1, npad_c), -1, jnp.int32).at[0, :n].set(t)

    grid = (npad_r // tm, npad_c // tn)

    # VMEM budget for the chosen tiles (double-buffered inputs + f32 scratch).
    vmem_need = (
        2 * tm * fpad * 2          # XM row block (bf16, 2 buffers)
        + 2 * fpad * tn * 2        # X^T column block (bf16, 2 buffers)
        + 2 * tm * tn * 4          # acc_ap / acc_an scratch (f32)
        + 2 * (tm + tn) * 4        # targets col/row (int32, 2 buffers)
        + 2 * 2 * tm * 4           # ap / an output blocks
        + tm * tn * 4              # headroom for dist / select temporaries
    )
    vmem_limit = min(64 * 1024 * 1024, max(2 * vmem_need, 16 * 1024 * 1024))

    cost = pl.CostEstimate(
        flops=2 * npad_r * npad_c * fpad,
        transcendentals=0,
        bytes_accessed=(npad_r * fpad * 2                       # XM (once/row blk)
                        + (npad_r // tm) * fpad * npad_c * 2    # X^T re-streamed
                        + npad_r * 8),                          # ap/an outputs
    )

    ap, an = pl.pallas_call(
        _triplet_dist_kernel,
        out_shape=(jax.ShapeDtypeStruct((npad_r, 1), jnp.float32),
                   jax.ShapeDtypeStruct((npad_r, 1), jnp.float32)),
        grid_spec=pltpu.PrefetchScalarGridSpec(
            num_scalar_prefetch=0,
            grid=grid,
            in_specs=[
                pl.BlockSpec((tm, fpad), lambda r, c: (r, 0)),   # XM row block
                pl.BlockSpec((fpad, tn), lambda r, c: (0, c)),   # X^T col block
                pl.BlockSpec((tm, 1), lambda r, c: (r, 0)),      # targets (rows)
                pl.BlockSpec((1, tn), lambda r, c: (0, c)),      # targets (cols)
            ],
            out_specs=(pl.BlockSpec((tm, 1), lambda r, c: (r, 0)),   # dist_ap
                       pl.BlockSpec((tm, 1), lambda r, c: (r, 0))),  # dist_an
            scratch_shapes=[pltpu.VMEM((tm, tn), jnp.float32),       # acc_ap
                            pltpu.VMEM((tm, tn), jnp.float32)],      # acc_an
        ),
        compiler_params=pltpu.CompilerParams(
            dimension_semantics=("parallel", "arbitrary"),
            vmem_limit_bytes=int(vmem_limit)),
        cost_estimate=cost,
    )(xm, xt, tcol, trow)

    dist_ap = ap[:n, 0]
    dist_an = an[:n, 0]
    # MarginRankingLoss(margin) with y = 1, reduction='mean'
    loss = jnp.mean(jnp.maximum(dist_ap - dist_an + jnp.float32(margin), 0.0))
    prec = jnp.sum((dist_an > dist_ap).astype(jnp.float32)) / jnp.float32(n)
    return loss, prec


def _reference(inputs, targets, M, margin=0.0):
    """Pure-JAX reference of the PyTorch forward (same bf16 MXU data path)."""
    n = inputs.shape[0]
    xb = inputs.astype(jnp.bfloat16)
    mb = M.astype(jnp.bfloat16)
    xm = jnp.dot(xb, mb, preferred_element_type=jnp.float32).astype(jnp.bfloat16)
    dist = jnp.dot(xm, xb.T, preferred_element_type=jnp.float32)
    mask = targets[:, None] == targets[None, :]
    dist_ap = jnp.max(jnp.where(mask, dist, -jnp.inf), axis=1)
    dist_an = jnp.min(jnp.where(mask, jnp.inf, dist), axis=1)
    loss = jnp.mean(jnp.maximum(dist_ap - dist_an + margin, 0.0))
    prec = jnp.sum((dist_an > dist_ap).astype(jnp.float32)) / n
    return loss, prec


if __name__ == "__main__":
    N = 8            # batch of embeddings
    F = 32           # feature_size
    MARGIN = 0.3

    key = jax.random.PRNGKey(0)
    k_x, k_m = jax.random.split(key)

    # deterministic parameter init matching the PyTorch __init__:
    # M_ ~ Uniform(-stdv, stdv), stdv = 1 / sqrt(feature_size)
    stdv = 1.0 / math.sqrt(F)
    M_param = jax.random.uniform(k_m, (F, F), jnp.float32,
                                 minval=-stdv, maxval=stdv)

    inputs = jax.random.normal(k_x, (N, F), jnp.float32)
    # each anchor has at least one positive (itself) and one negative
    targets = jnp.array([0, 0, 1, 1, 2, 2, 3, 3], dtype=jnp.int32)

    loss, prec = metric_triplet_loss(inputs, targets, M_param, margin=MARGIN)
    loss = jax.block_until_ready(loss)
    prec = jax.block_until_ready(prec)

    ref_loss, ref_prec = _reference(inputs, targets, M_param, margin=MARGIN)
    assert jnp.allclose(loss, ref_loss, atol=1e-3, rtol=1e-3), (loss, ref_loss)
    assert jnp.allclose(prec, ref_prec, atol=1e-6), (prec, ref_prec)

    print("KERNEL_OK")
</pallas_src>

<mosaic_0001>
module attributes {stable_mosaic.version = 11 : i64} {
  func.func @_triplet_dist_kernel(%arg0: i32, %arg1: i32, %arg2: memref<128x128xbf16, #tpu.memory_space<vmem>>, %arg3: memref<128x128xbf16, #tpu.memory_space<vmem>>, %arg4: memref<128x1xi32, #tpu.memory_space<vmem>>, %arg5: memref<1x128xi32, #tpu.memory_space<vmem>>, %arg6: memref<128x1xf32, #tpu.memory_space<vmem>>, %arg7: memref<128x1xf32, #tpu.memory_space<vmem>>, %arg8: memref<128x128xf32, #tpu.memory_space<vmem>>, %arg9: memref<128x128xf32, #tpu.memory_space<vmem>>) attributes {dimension_semantics = [#tpu.dimension_semantics<parallel>, #tpu.dimension_semantics<arbitrary>], iteration_bounds = array<i64: 1, 1>, scalar_prefetch = 0 : i64, scratch_operands = 2 : i64, tpu.core_type = #tpu.core_type<tc>, window_params = [{transform_indices = @transform_0, window_bounds = array<i64: 128, 128>}, {transform_indices = @transform_1, window_bounds = array<i64: 128, 128>}, {transform_indices = @transform_2, window_bounds = array<i64: 128, 1>}, {transform_indices = @transform_3, window_bounds = array<i64: 1, 128>}, {transform_indices = @transform_4, window_bounds = array<i64: 128, 1>}, {transform_indices = @transform_5, window_bounds = array<i64: 128, 1>}]} {
    %c0_i32 = arith.constant 0 : i32
    %0 = arith.cmpi eq, %arg1, %c0_i32 : i32
    %1 = arith.extui %0 : i1 to i32
    %c0_i32_0 = arith.constant 0 : i32
    %2 = arith.cmpi ne, %1, %c0_i32_0 : i32
    scf.if %2 {
      %cst_22 = arith.constant 0xFF800000 : f32
      %29 = vector.broadcast %cst_22 : f32 to vector<128x128xf32>
      %c0_23 = arith.constant 0 : index
      %c0_24 = arith.constant 0 : index
      %30 = vector.load %arg8[%c0_23, %c0_24] : memref<128x128xf32, #tpu.memory_space<vmem>>, vector<128x128xf32>
      tpu.vector_store %arg8[%c0_23, %c0_24], %29 {strides = array<i32>} : memref<128x128xf32, #tpu.memory_space<vmem>>, vector<128x128xf32>,
      %cst_25 = arith.constant 0x7F800000 : f32
      %31 = vector.broadcast %cst_25 : f32 to vector<128x128xf32>
      %c0_26 = arith.constant 0 : index
      %c0_27 = arith.constant 0 : index
      %32 = vector.load %arg9[%c0_26, %c0_27] : memref<128x128xf32, #tpu.memory_space<vmem>>, vector<128x128xf32>
      tpu.vector_store %arg9[%c0_26, %c0_27], %31 {strides = array<i32>} : memref<128x128xf32, #tpu.memory_space<vmem>>, vector<128x128xf32>,
    } else {
    }
    %c0 = arith.constant 0 : index
    %c0_1 = arith.constant 0 : index
    %3 = vector.load %arg2[%c0, %c0_1] : memref<128x128xbf16, #tpu.memory_space<vmem>>, vector<128x128xbf16>
    %c0_2 = arith.constant 0 : index
    %c0_3 = arith.constant 0 : index
    %4 = vector.load %arg3[%c0_2, %c0_3] : memref<128x128xbf16, #tpu.memory_space<vmem>>, vector<128x128xbf16>
    %cst = arith.constant dense<0.000000e+00> : vector<128x128xf32>
    %5 = tpu.matmul %3, %4, %cst {dimension_numbers = #tpu.dot_dimension_numbers<[1], [0], [0], [1], [0, 0, 1, 1], [], []>} : vector<128x128xbf16>, vector<128x128xbf16>, vector<128x128xf32> -> vector<128x128xf32>
    %c0_4 = arith.constant 0 : index
    %c0_5 = arith.constant 0 : index
    %6 = vector.load %arg4[%c0_4, %c0_5] : memref<128x1xi32, #tpu.memory_space<vmem>>, vector<128x1xi32>
    %c0_6 = arith.constant 0 : index
    %c0_7 = arith.constant 0 : index
    %7 = vector.load %arg5[%c0_6, %c0_7] : memref<1x128xi32, #tpu.memory_space<vmem>>, vector<1x128xi32>
    %8 = vector.broadcast %6 : vector<128x1xi32> to vector<128x128xi32>
    %9 = vector.broadcast %7 : vector<1x128xi32> to vector<128x128xi32>
    %10 = arith.cmpi eq, %8, %9 : vector<128x128xi32>
    %c0_i32_8 = arith.constant 0 : i32
    %11 = vector.broadcast %c0_i32_8 : i32 to vector<1x128xi32>
    %12 = arith.cmpi sge, %7, %11 : vector<1x128xi32>
    %cst_9 = arith.constant dense<true> : vector<128x128xi1>
    %13 = arith.xori %10, %cst_9 : vector<128x128xi1>
    %14 = vector.broadcast %12 : vector<1x128xi1> to vector<128x128xi1>
    %15 = arith.andi %14, %13 : vector<128x128xi1>
    %c0_10 = arith.constant 0 : index
    %c0_11 = arith.constant 0 : index
    %16 = vector.load %arg8[%c0_10, %c0_11] : memref<128x128xf32, #tpu.memory_space<vmem>>, vector<128x128xf32>
    %cst_12 = arith.constant 0xFF800000 : f32
    %17 = vector.broadcast %cst_12 : f32 to vector<128x128xf32>
    %18 = arith.select %10, %5, %17 : vector<128x128xi1>, vector<128x128xf32>
    %19 = arith.maximumf %16, %18 : vector<128x128xf32>
    %c0_13 = arith.constant 0 : index
    %c0_14 = arith.constant 0 : index
    %20 = vector.load %arg8[%c0_13, %c0_14] : memref<128x128xf32, #tpu.memory_space<vmem>>, vector<128x128xf32>
    tpu.vector_store %arg8[%c0_13, %c0_14], %19 {strides = array<i32>} : memref<128x128xf32, #tpu.memory_space<vmem>>, vector<128x128xf32>,
    %c0_15 = arith.constant 0 : index
    %c0_16 = arith.constant 0 : index
    %21 = vector.load %arg9[%c0_15, %c0_16] : memref<128x128xf32, #tpu.memory_space<vmem>>, vector<128x128xf32>
    %cst_17 = arith.constant 0x7F800000 : f32
    %22 = vector.broadcast %cst_17 : f32 to vector<128x128xf32>
    %23 = arith.select %15, %5, %22 : vector<128x128xi1>, vector<128x128xf32>
    %24 = arith.minimumf %21, %23 : vector<128x128xf32>
    %c0_18 = arith.constant 0 : index
    %c0_19 = arith.constant 0 : index
    %25 = vector.load %arg9[%c0_18, %c0_19] : memref<128x128xf32, #tpu.memory_space<vmem>>, vector<128x128xf32>
    tpu.vector_store %arg9[%c0_18, %c0_19], %24 {strides = array<i32>} : memref<128x128xf32, #tpu.memory_space<vmem>>, vector<128x128xf32>,
    %c0_i32_20 = arith.constant 0 : i32
    %26 = arith.cmpi eq, %arg1, %c0_i32_20 : i32
    %27 = arith.extui %26 : i1 to i32
    %c0_i32_21 = arith.constant 0 : i32
    %28 = arith.cmpi ne, %27, %c0_i32_21 : i32
    scf.if %28 {
      %c0_22 = arith.constant 0 : index
      %c0_23 = arith.constant 0 : index
      %29 = vector.load %arg8[%c0_22, %c0_23] : memref<128x128xf32, #tpu.memory_space<vmem>>, vector<128x128xf32>
      %cst_24 = arith.constant dense<0xFF800000> : vector<128xf32>
      %30 = vector.multi_reduction <maximumf>, %29, %cst_24 [1] : vector<128x128xf32> to vector<128xf32>
      %31 = vector.shape_cast %30 : vector<128xf32> to vector<128x1xf32>
      %c0_25 = arith.constant 0 : index
      %c0_26 = arith.constant 0 : index
      %32 = vector.load %arg6[%c0_25, %c0_26] : memref<128x1xf32, #tpu.memory_space<vmem>>, vector<128x1xf32>
      tpu.vector_store %arg6[%c0_25, %c0_26], %31 {strides = array<i32>} : memref<128x1xf32, #tpu.memory_space<vmem>>, vector<128x1xf32>,
      %c0_27 = arith.constant 0 : index
      %c0_28 = arith.constant 0 : index
      %33 = vector.load %arg9[%c0_27, %c0_28] : memref<128x128xf32, #tpu.memory_space<vmem>>, vector<128x128xf32>
      %cst_29 = arith.constant dense<0x7F800000> : vector<128xf32>
      %34 = vector.multi_reduction <minimumf>, %33, %cst_29 [1] : vector<128x128xf32> to vector<128xf32>
      %35 = vector.shape_cast %34 : vector<128xf32> to vector<128x1xf32>
      %c0_30 = arith.constant 0 : index
      %c0_31 = arith.constant 0 : index
      %36 = vector.load %arg7[%c0_30, %c0_31] : memref<128x1xf32, #tpu.memory_space<vmem>>, vector<128x1xf32>
      tpu.vector_store %arg7[%c0_30, %c0_31], %35 {strides = array<i32>} : memref<128x1xf32, #tpu.memory_space<vmem>>, vector<128x1xf32>,
    } else {
    }
    return
  }
  func.func @transform_0(%arg0: i32, %arg1: i32) -> (i32, i32) {
    %c0_i32 = arith.constant 0 : i32
    %c0_i32_0 = arith.constant 0 : i32
    return %arg0, %c0_i32 : i32, i32
  }
  func.func @transform_1(%arg0: i32, %arg1: i32) -> (i32, i32) {
    %c0_i32 = arith.constant 0 : i32
    %c0_i32_0 = arith.constant 0 : i32
    return %c0_i32, %arg1 : i32, i32
  }
  func.func @transform_2(%arg0: i32, %arg1: i32) -> (i32, i32) {
    %c0_i32 = arith.constant 0 : i32
    %c0_i32_0 = arith.constant 0 : i32
    return %arg0, %c0_i32 : i32, i32
  }
  func.func @transform_3(%arg0: i32, %arg1: i32) -> (i32, i32) {
    %c0_i32 = arith.constant 0 : i32
    %c0_i32_0 = arith.constant 0 : i32
    return %c0_i32, %arg1 : i32, i32
  }
  func.func @transform_4(%arg0: i32, %arg1: i32) -> (i32, i32) {
    %c0_i32 = arith.constant 0 : i32
    %c0_i32_0 = arith.constant 0 : i32
    return %arg0, %c0_i32 : i32, i32
  }
  func.func @transform_5(%arg0: i32, %arg1: i32) -> (i32, i32) {
    %c0_i32 = arith.constant 0 : i32
    %c0_i32_0 = arith.constant 0 : i32
    return %arg0, %c0_i32 : i32, i32
  }
}

</mosaic_0001>

<llo_original>
// kernel: tpu_custom_call.1
$region0: #{tpu_custom_call.1}
  #allocation0 [shape = 'u32[]', space=smem, size = 0x4, offset = 0x4, fixed_abs, tag = 'smem constant byte address 0x4 - core index']
  #allocation1 [shape = 'u32[144,128]{1,0:T(1,128)}', space=vmem, size = 0x12000, scoped, tag = 'internal scratch']
  #allocation2 [shape = 'f32[128,128]{1,0:T(8,128)}', space=vmem, size = 0x10000, scoped, tag = 'scratch operand']
  #allocation3 [shape = 'f32[128,128]{1,0:T(8,128)}', space=vmem, size = 0x10000, scoped, tag = 'scratch operand']
  %s0 = inlined_call_operand.vmem [shape: bf16[128,128], index: 0, kind: input, shape index: {}]
  %s1 = inlined_call_operand.vmem [shape: bf16[128,128], index: 1, kind: input, shape index: {}]
  %s2 = inlined_call_operand.vmem [shape: s32[128,1], index: 2, kind: input, shape index: {}]
  %s3 = inlined_call_operand.vmem [shape: s32[1,128], index: 3, kind: input, shape index: {}]
  %s4 = inlined_call_operand.vmem [shape: f32[128,1], index: 4, kind: output, shape index: {0}]
  %s5 = inlined_call_operand.vmem [shape: f32[128,1], index: 5, kind: output, shape index: {1}]
  %6 = xla_tuple %s4, %s5
  %s7 = sld [smem:[#allocation0]]
  $region42: #{tpu_custom_call.1} parent=0
    _
  %s9 = ssub.s32 1, %s7
  %s10 = scalar_select 0, %s9, %s7
  // Predicated region
  $region2: #{tpu_custom_call.1} parent=0 // pred_check
    _
  $region3: #{tpu_custom_call.1} parent=0 // pred_check_branch
    %12 = sbr.rel (0) target = $region5
  $region4: #{tpu_custom_call.1} parent=0 // pred_region
    _
  $region5: #{tpu_custom_call.1} parent=0 // pred_fallthru
    _
  // Predicated region
  $region6: #{tpu_custom_call.1} parent=0 // pred_check
    _
  $region7: #{tpu_custom_call.1} parent=0 // pred_check_branch
    %14 = sbr.rel (0) target = $region9
  $region8: #{tpu_custom_call.1} parent=0 // pred_region
    _
  $region9: #{tpu_custom_call.1} parent=0 // pred_fallthru
    _
  // Predicated region
  $region10: #{tpu_custom_call.1} parent=0 // pred_check
    _
  $region11: #{tpu_custom_call.1} parent=0 // pred_check_branch
    %16 = sbr.rel (0) target = $region13
  $region12: #{tpu_custom_call.1} parent=0 // pred_region
    _
  $region13: #{tpu_custom_call.1} parent=0 // pred_fallthru
    _
  // Predicated region
  $region14: #{tpu_custom_call.1} parent=0 // pred_check
    _
  $region15: #{tpu_custom_call.1} parent=0 // pred_check_branch
    %18 = sbr.rel (0) target = $region17
  $region16: #{tpu_custom_call.1} parent=0 // pred_region
    _
  $region17: #{tpu_custom_call.1} parent=0 // pred_fallthru
    _
  %p20 = scmp.eq.s32.totalorder 0, 0
  // Predicated region
  $region18: #{tpu_custom_call.1} parent=0 // pred_check
    %p21 = pneg %p20
  $region19: #{tpu_custom_call.1} parent=0 // pred_check_branch
    %23 = sbr.rel (%p21) target = $region21
  $region20: #{tpu_custom_call.1} parent=0 // pred_region
    %24 = vst [vmem:[#allocation2] sm:$0xff] -inf
    %25 = vst [vmem:[#allocation2 + $0x8] sm:$0xff] -inf
    %26 = vst [vmem:[#allocation2 + $0x10] sm:$0xff] -inf
    %27 = vst [vmem:[#allocation2 + $0x18] sm:$0xff] -inf
    %28 = vst [vmem:[#allocation2 + $0x20] sm:$0xff] -inf
    %29 = vst [vmem:[#allocation2 + $0x28] sm:$0xff] -inf
    %30 = vst [vmem:[#allocation2 + $0x30] sm:$0xff] -inf
    %31 = vst [vmem:[#allocation2 + $0x38] sm:$0xff] -inf
    %32 = vst [vmem:[#allocation2 + $0x40] sm:$0xff] -inf
    %33 = vst [vmem:[#allocation2 + $0x48] sm:$0xff] -inf
    %34 = vst [vmem:[#allocation2 + $0x50] sm:$0xff] -inf
    %35 = vst [vmem:[#allocation2 + $0x58] sm:$0xff] -inf
    %36 = vst [vmem:[#allocation2 + $0x60] sm:$0xff] -inf
    %37 = vst [vmem:[#allocation2 + $0x68] sm:$0xff] -inf
    %38 = vst [vmem:[#allocation2 + $0x70] sm:$0xff] -inf
    %39 = vst [vmem:[#allocation2 + $0x78] sm:$0xff] -inf
    %40 = vst [vmem:[#allocation3] sm:$0xff] inf
    %41 = vst [vmem:[#allocation3 + $0x8] sm:$0xff] inf
    %42 = vst [vmem:[#allocation3 + $0x10] sm:$0xff] inf
    %43 = vst [vmem:[#allocation3 + $0x18] sm:$0xff] inf
    %44 = vst [vmem:[#allocation3 + $0x20] sm:$0xff] inf
    %45 = vst [vmem:[#allocation3 + $0x28] sm:$0xff] inf
    %46 = vst [vmem:[#allocation3 + $0x30] sm:$0xff] inf
    %47 = vst [vmem:[#allocation3 + $0x38] sm:$0xff] inf
    %48 = vst [vmem:[#allocation3 + $0x40] sm:$0xff] inf
    %49 = vst [vmem:[#allocation3 + $0x48] sm:$0xff] inf
    %50 = vst [vmem:[#allocation3 + $0x50] sm:$0xff] inf
    %51 = vst [vmem:[#allocation3 + $0x58] sm:$0xff] inf
    %52 = vst [vmem:[#allocation3 + $0x60] sm:$0xff] inf
    %53 = vst [vmem:[#allocation3 + $0x68] sm:$0xff] inf
    %54 = vst [vmem:[#allocation3 + $0x70] sm:$0xff] inf
    %55 = vst [vmem:[#allocation3 + $0x78] sm:$0xff] inf
  $region21: #{tpu_custom_call.1} parent=0 // pred_fallthru
    _
  %v56 = vld [vmem:[%s0] sm:$0xf]
  %v57 = vld [vmem:[%s0 + $0x4] sm:$0xf]
  %v58 = vld [vmem:[%s0 + $0x8] sm:$0xf]
  %v59 = vld [vmem:[%s0 + $0xc] sm:$0xf]
  %v60 = vld [vmem:[%s0 + $0x10] sm:$0xf]
  %v61 = vld [vmem:[%s0 + $0x14] sm:$0xf]
  %v62 = vld [vmem:[%s0 + $0x18] sm:$0xf]
  %v63 = vld [vmem:[%s0 + $0x1c] sm:$0xf]
  %v64 = vld [vmem:[%s0 + $0x20] sm:$0xf]
  %v65 = vld [vmem:[%s0 + $0x24] sm:$0xf]
  %v66 = vld [vmem:[%s0 + $0x28] sm:$0xf]
  %v67 = vld [vmem:[%s0 + $0x2c] sm:$0xf]
  %v68 = vld [vmem:[%s0 + $0x30] sm:$0xf]
  %v69 = vld [vmem:[%s0 + $0x34] sm:$0xf]
  %v70 = vld [vmem:[%s0 + $0x38] sm:$0xf]
  %v71 = vld [vmem:[%s0 + $0x3c] sm:$0xf]
  %v72 = vld [vmem:[%s1] sm:$0xf]
  %v73 = vld [vmem:[%s1 + $0x4] sm:$0xf]
  %v74 = vld [vmem:[%s1 + $0x8] sm:$0xf]
  %v75 = vld [vmem:[%s1 + $0xc] sm:$0xf]
  %v76 = vld [vmem:[%s1 + $0x10] sm:$0xf]
  %v77 = vld [vmem:[%s1 + $0x14] sm:$0xf]
  %v78 = vld [vmem:[%s1 + $0x18] sm:$0xf]
  %v79 = vld [vmem:[%s1 + $0x1c] sm:$0xf]
  %v80 = vld [vmem:[%s1 + $0x20] sm:$0xf]
  %v81 = vld [vmem:[%s1 + $0x24] sm:$0xf]
  %v82 = vld [vmem:[%s1 + $0x28] sm:$0xf]
  %v83 = vld [vmem:[%s1 + $0x2c] sm:$0xf]
  %v84 = vld [vmem:[%s1 + $0x30] sm:$0xf]
  %v85 = vld [vmem:[%s1 + $0x34] sm:$0xf]
  %v86 = vld [vmem:[%s1 + $0x38] sm:$0xf]
  %v87 = vld [vmem:[%s1 + $0x3c] sm:$0xf]
  %v104 = vunpack.c.l.b16 %v56
  %v105 = vunpack.c.l.b16 %v57
  %v106 = vunpack.c.l.b16 %v58
  %v107 = vunpack.c.l.b16 %v59
  %v108 = vunpack.c.l.b16 %v60
  %v109 = vunpack.c.l.b16 %v61
  %v110 = vunpack.c.l.b16 %v62
  %v111 = vunpack.c.l.b16 %v63
  %v112 = vunpack.c.l.b16 %v64
  %v113 = vunpack.c.l.b16 %v65
  %v114 = vunpack.c.l.b16 %v66
  %v115 = vunpack.c.l.b16 %v67
  %v116 = vunpack.c.l.b16 %v68
  %v117 = vunpack.c.l.b16 %v69
  %v118 = vunpack.c.l.b16 %v70
  %v119 = vunpack.c.l.b16 %v71
  %v120 = vpack.c.b16 %v105, %v104
  %v121 = vpack.c.b16 %v107, %v106
  %v122 = vpack.c.b16 %v109, %v108
  %v123 = vpack.c.b16 %v111, %v110
  %v124 = vpack.c.b16 %v113, %v112
  %v125 = vpack.c.b16 %v115, %v114
  %v126 = vpack.c.b16 %v117, %v116
  %v127 = vpack.c.b16 %v119, %v118
  %v152 = vunpack.c.l.b16 %v72
  %v153 = vunpack.c.l.b16 %v73
  %v154 = vunpack.c.l.b16 %v74
  %v155 = vunpack.c.l.b16 %v75
  %v156 = vunpack.c.l.b16 %v76
  %v157 = vunpack.c.l.b16 %v77
  %v158 = vunpack.c.l.b16 %v78
  %v159 = vunpack.c.l.b16 %v79
  %v160 = vunpack.c.l.b16 %v80
  %v161 = vunpack.c.l.b16 %v81
  %v162 = vunpack.c.l.b16 %v82
  %v163 = vunpack.c.l.b16 %v83
  %v164 = vunpack.c.l.b16 %v84
  %v165 = vunpack.c.l.b16 %v85
  %v166 = vunpack.c.l.b16 %v86
  %v167 = vunpack.c.l.b16 %v87
  %v168 = vpack.c.b16 %v153, %v152
  %v169 = vpack.c.b16 %v155, %v154
  %v170 = vpack.c.b16 %v157, %v156
  %v171 = vpack.c.b16 %v159, %v158
  %v172 = vpack.c.b16 %v161, %v160
  %v173 = vpack.c.b16 %v163, %v162
  %v174 = vpack.c.b16 %v165, %v164
  %v175 = vpack.c.b16 %v167, %v166
  %184 = vmatprep.subr.bf16.mxu0 0
  %185 = vmatpush1.bf16.msra.mxu0 %v175
  %186 = vmatprep.subr.bf16.mxu0 0
  %187 = vmatpush1.bf16.msra.mxu0 %v174
  %188 = vmatprep.subr.bf16.mxu0 0
  %189 = vmatpush1.bf16.msra.mxu0 %v173
  %190 = vmatprep.subr.bf16.mxu0 0
  %191 = vmatpush1.bf16.msra.mxu0 %v172
  %192 = vmatprep.subr.bf16.mxu0 0
  %193 = vmatpush1.bf16.msra.mxu0 %v171
  %194 = vmatprep.subr.bf16.mxu0 0
  %195 = vmatpush1.bf16.msra.mxu0 %v170
  %196 = vmatprep.subr.bf16.mxu0 0
  %197 = vmatpush1.bf16.msra.mxu0 %v169
  %198 = vmatprep.subr.bf16.mxu0 0
  %199 = vmatpush1.bf16.msra.mxu0 %v168
  %200 = vmatprep.subr.bf16.mxu0 0
  %201 = vmatpush2.bf16.msra.mxu0 0
  %202 = vmatprep.subr.bf16.mxu0 0
  %203 = vmatpush2.bf16.msra.mxu0 0
  %204 = vmatprep.subr.bf16.mxu0 0
  %205 = vmatpush2.bf16.msra.mxu0 0
  %206 = vmatprep.subr.bf16.mxu0 0
  %207 = vmatpush2.bf16.msra.mxu0 0
  %208 = vmatprep.subr.bf16.mxu0 0
  %209 = vmatpush2.bf16.msra.mxu0 0
  %210 = vmatprep.subr.bf16.mxu0 0
  %211 = vmatpush2.bf16.msra.mxu0 0
  %212 = vmatprep.subr.bf16.mxu0 0
  %213 = vmatpush2.bf16.msra.mxu0 0
  %214 = vmatprep.subr.bf16.mxu0 0
  %215 = vmatpush2.bf16.msra.mxu0 0
  %216 = vmatprep.mubr.bf16.mxu0 0
  %217 = vmatmul.mubr.bf16.gmra.mxu0 %v120
  %v218 = vpop.f32.mrf.mxu0
  %v219 = vadd.f32 0.0, %v218
  %v220 = vpop.f32.mrf.mxu0
  %v221 = vpop.f32.mrf.mxu0
  %v222 = vadd.f32 0.0, %v221
  %v223 = vpop.f32.mrf.mxu0
  %224 = vmatprep.mubr.bf16.mxu0 0
  %225 = vmatmul.mubr.bf16.gmra.mxu0 %v121
  %v226 = vpop.f32.mrf.mxu0
  %v227 = vadd.f32 0.0, %v226
  %v228 = vpop.f32.mrf.mxu0
  %v229 = vpop.f32.mrf.mxu0
  %v230 = vadd.f32 0.0, %v229
  %v231 = vpop.f32.mrf.mxu0
  %232 = vmatprep.mubr.bf16.mxu0 0
  %233 = vmatmul.mubr.bf16.gmra.mxu0 %v122
  %v234 = vpop.f32.mrf.mxu0
  %v235 = vadd.f32 0.0, %v234
  %v236 = vpop.f32.mrf.mxu0
  %v237 = vpop.f32.mrf.mxu0
  %v238 = vadd.f32 0.0, %v237
  %v239 = vpop.f32.mrf.mxu0
  %240 = vmatprep.mubr.bf16.mxu0 0
  %241 = vmatmul.mubr.bf16.gmra.mxu0 %v123
  %v242 = vpop.f32.mrf.mxu0
  %v243 = vadd.f32 0.0, %v242
  %v244 = vpop.f32.mrf.mxu0
  %v245 = vpop.f32.mrf.mxu0
  %v246 = vadd.f32 0.0, %v245
  %v247 = vpop.f32.mrf.mxu0
  %248 = vmatprep.mubr.bf16.mxu0 0
  %249 = vmatmul.mubr.bf16.gmra.mxu0 %v124
  %v250 = vpop.f32.mrf.mxu0
  %v251 = vadd.f32 0.0, %v250
  %v252 = vpop.f32.mrf.mxu0
  %v253 = vpop.f32.mrf.mxu0
  %v254 = vadd.f32 0.0, %v253
  %v255 = vpop.f32.mrf.mxu0
  %256 = vmatprep.mubr.bf16.mxu0 0
  %257 = vmatmul.mubr.bf16.gmra.mxu0 %v125
  %v258 = vpop.f32.mrf.mxu0
  %v259 = vadd.f32 0.0, %v258
  %v260 = vpop.f32.mrf.mxu0
  %v261 = vpop.f32.mrf.mxu0
  %v262 = vadd.f32 0.0, %v261
  %v263 = vpop.f32.mrf.mxu0
  %264 = vmatprep.mubr.bf16.mxu0 0
  %265 = vmatmul.mubr.bf16.gmra.mxu0 %v126
  %v266 = vpop.f32.mrf.mxu0
  %v267 = vadd.f32 0.0, %v266
  %v268 = vpop.f32.mrf.mxu0
  %v269 = vpop.f32.mrf.mxu0
  %v270 = vadd.f32 0.0, %v269
  %v271 = vpop.f32.mrf.mxu0
  %272 = vmatprep.mubr.bf16.mxu0 0
  %273 = vmatmul.mubr.bf16.gmra.mxu0 %v127
  %v274 = vpop.f32.mrf.mxu0
  %v275 = vadd.f32 0.0, %v274
  %v276 = vpop.f32.mrf.mxu0
  %v277 = vpop.f32.mrf.mxu0
  %v278 = vadd.f32 0.0, %v277
  %v279 = vpop.f32.mrf.mxu0
  %280 = vdwg.mxu0
  %v281 = vld [vmem:[%s2] sm:$0xff]
  %v282 = vld [vmem:[%s2 + $0x8] sm:$0xff]
  %v283 = vld [vmem:[%s2 + $0x10] sm:$0xff]
  %v284 = vld [vmem:[%s2 + $0x18] sm:$0xff]
  %v285 = vld [vmem:[%s2 + $0x20] sm:$0xff]
  %v286 = vld [vmem:[%s2 + $0x28] sm:$0xff]
  %v287 = vld [vmem:[%s2 + $0x30] sm:$0xff]
  %v288 = vld [vmem:[%s2 + $0x38] sm:$0xff]
  %v289 = vld [vmem:[%s2 + $0x40] sm:$0xff]
  %v290 = vld [vmem:[%s2 + $0x48] sm:$0xff]
  %v291 = vld [vmem:[%s2 + $0x50] sm:$0xff]
  %v292 = vld [vmem:[%s2 + $0x58] sm:$0xff]
  %v293 = vld [vmem:[%s2 + $0x60] sm:$0xff]
  %v294 = vld [vmem:[%s2 + $0x68] sm:$0xff]
  %v295 = vld [vmem:[%s2 + $0x70] sm:$0xff]
  %v296 = vld [vmem:[%s2 + $0x78] sm:$0xff]
  %v297 = vld [vmem:[%s3] sm:$0x1]
  %298 = vset.pattern.permute.xlu0 0
  %299 = vperm.xlu0 %298, %v281
  %v300 = vpop.permute.xlu0 %299
  %301 = vset.pattern.permute.xlu0 0
  %302 = vperm.xlu0 %301, %v282
  %v303 = vpop.permute.xlu0 %302
  %304 = vset.pattern.permute.xlu0 0
  %305 = vperm.xlu0 %304, %v283
  %v306 = vpop.permute.xlu0 %305
  %307 = vset.pattern.permute.xlu0 0
  %308 = vperm.xlu0 %307, %v284
  %v309 = vpop.permute.xlu0 %308
  %310 = vset.pattern.permute.xlu0 0
  %311 = vperm.xlu0 %310, %v285
  %v312 = vpop.permute.xlu0 %311
  %313 = vset.pattern.permute.xlu0 0
  %314 = vperm.xlu0 %313, %v286
  %v315 = vpop.permute.xlu0 %314
  %316 = vset.pattern.permute.xlu0 0
  %317 = vperm.xlu0 %316, %v287
  %v318 = vpop.permute.xlu0 %317
  %319 = vset.pattern.permute.xlu0 0
  %320 = vperm.xlu0 %319, %v288
  %v321 = vpop.permute.xlu0 %320
  %322 = vset.pattern.permute.xlu0 0
  %323 = vperm.xlu0 %322, %v289
  %v324 = vpop.permute.xlu0 %323
  %325 = vset.pattern.permute.xlu0 0
  %326 = vperm.xlu0 %325, %v290
  %v327 = vpop.permute.xlu0 %326
  %328 = vset.pattern.permute.xlu0 0
  %329 = vperm.xlu0 %328, %v291
  %v330 = vpop.permute.xlu0 %329
  %331 = vset.pattern.permute.xlu0 0
  %332 = vperm.xlu0 %331, %v292
  %v333 = vpop.permute.xlu0 %332
  %334 = vset.pattern.permute.xlu0 0
  %335 = vperm.xlu0 %334, %v293
  %v336 = vpop.permute.xlu0 %335
  %337 = vset.pattern.permute.xlu0 0
  %338 = vperm.xlu0 %337, %v294
  %v339 = vpop.permute.xlu0 %338
  %340 = vset.pattern.permute.xlu0 0
  %341 = vperm.xlu0 %340, %v295
  %v342 = vpop.permute.xlu0 %341
  %343 = vset.pattern.permute.xlu0 0
  %344 = vperm.xlu0 %343, %v296
  %v345 = vpop.permute.xlu0 %344
  %v346 = vlaneseq
  %v347 = vshrl.u32 %v346, 7
  %v348 = vsub.s32 0, %v347
  %v349 = vrot.slane %v297, %v348
  %vm350 = vcmp.eq.s32.totalorder %v300, %v349
  %vm351 = vcmp.eq.s32.totalorder %v303, %v349
  %vm352 = vcmp.eq.s32.totalorder %v306, %v349
  %vm353 = vcmp.eq.s32.totalorder %v309, %v349
  %vm354 = vcmp.eq.s32.totalorder %v312, %v349
  %vm355 = vcmp.eq.s32.totalorder %v315, %v349
  %vm356 = vcmp.eq.s32.totalorder %v318, %v349
  %vm357 = vcmp.eq.s32.totalorder %v321, %v349
  %vm358 = vcmp.eq.s32.totalorder %v324, %v349
  %vm359 = vcmp.eq.s32.totalorder %v327, %v349
  %vm360 = vcmp.eq.s32.totalorder %v330, %v349
  %vm361 = vcmp.eq.s32.totalorder %v333, %v349
  %vm362 = vcmp.eq.s32.totalorder %v336, %v349
  %vm363 = vcmp.eq.s32.totalorder %v339, %v349
  %vm364 = vcmp.eq.s32.totalorder %v342, %v349
  %vm365 = vcmp.eq.s32.totalorder %v345, %v349
  %vm366 = vcmp.ge.s32.totalorder %v297, 0
  %vm367 = vmxor %vm350, 1
  %vm368 = vmxor %vm351, 1
  %vm369 = vmxor %vm352, 1
  %vm370 = vmxor %vm353, 1
  %vm371 = vmxor %vm354, 1
  %vm372 = vmxor %vm355, 1
  %vm373 = vmxor %vm356, 1
  %vm374 = vmxor %vm357, 1
  %vm375 = vmxor %vm358, 1
  %vm376 = vmxor %vm359, 1
  %vm377 = vmxor %vm360, 1
  %vm378 = vmxor %vm361, 1
  %vm379 = vmxor %vm362, 1
  %vm380 = vmxor %vm363, 1
  %vm381 = vmxor %vm364, 1
  %vm382 = vmxor %vm365, 1
  %v383 = vsel %vm366, 1, 0
  %v384 = vlaneseq
  %v385 = vshrl.u32 %v384, 7
  %v386 = vsub.s32 0, %v385
  %v387 = vrot.slane %v383, %v386
  %vm388 = vcmp.eq.s32.totalorder %v387, 1
  %vm389 = vmand %vm388, %vm367
  %vm390 = vmand %vm388, %vm368
  %vm391 = vmand %vm388, %vm369
  %vm392 = vmand %vm388, %vm370
  %vm393 = vmand %vm388, %vm371
  %vm394 = vmand %vm388, %vm372
  %vm395 = vmand %vm388, %vm373
  %vm396 = vmand %vm388, %vm374
  %vm397 = vmand %vm388, %vm375
  %vm398 = vmand %vm388, %vm376
  %vm399 = vmand %vm388, %vm377
  %vm400 = vmand %vm388, %vm378
  %vm401 = vmand %vm388, %vm379
  %vm402 = vmand %vm388, %vm380
  %vm403 = vmand %vm388, %vm381
  %vm404 = vmand %vm388, %vm382
  %v405 = vld [vmem:[#allocation2] sm:$0xff]
  %v406 = vld [vmem:[#allocation2 + $0x8] sm:$0xff]
  %v407 = vld [vmem:[#allocation2 + $0x10] sm:$0xff]
  %v408 = vld [vmem:[#allocation2 + $0x18] sm:$0xff]
  %v409 = vld [vmem:[#allocation2 + $0x20] sm:$0xff]
  %v410 = vld [vmem:[#allocation2 + $0x28] sm:$0xff]
  %v411 = vld [vmem:[#allocation2 + $0x30] sm:$0xff]
  %v412 = vld [vmem:[#allocation2 + $0x38] sm:$0xff]
  %v413 = vld [vmem:[#allocation2 + $0x40] sm:$0xff]
  %v414 = vld [vmem:[#allocation2 + $0x48] sm:$0xff]
  %v415 = vld [vmem:[#allocation2 + $0x50] sm:$0xff]
  %v416 = vld [vmem:[#allocation2 + $0x58] sm:$0xff]
  %v417 = vld [vmem:[#allocation2 + $0x60] sm:$0xff]
  %v418 = vld [vmem:[#allocation2 + $0x68] sm:$0xff]
  %v419 = vld [vmem:[#allocation2 + $0x70] sm:$0xff]
  %v420 = vld [vmem:[#allocation2 + $0x78] sm:$0xff]
  %v421 = vsel %vm350, %v219, -inf
  %v422 = vsel %vm351, %v222, -inf
  %v423 = vsel %vm352, %v227, -inf
  %v424 = vsel %vm353, %v230, -inf
  %v425 = vsel %vm354, %v235, -inf
  %v426 = vsel %vm355, %v238, -inf
  %v427 = vsel %vm356, %v243, -inf
  %v428 = vsel %vm357, %v246, -inf
  %v429 = vsel %vm358, %v251, -inf
  %v430 = vsel %vm359, %v254, -inf
  %v431 = vsel %vm360, %v259, -inf
  %v432 = vsel %vm361, %v262, -inf
  %v433 = vsel %vm362, %v267, -inf
  %v434 = vsel %vm363, %v270, -inf
  %v435 = vsel %vm364, %v275, -inf
  %v436 = vsel %vm365, %v278, -inf
  %v437 = vmax.f32 %v405, %v421
  %v438 = vmax.f32 %v406, %v422
  %v439 = vmax.f32 %v407, %v423
  %v440 = vmax.f32 %v408, %v424
  %v441 = vmax.f32 %v409, %v425
  %v442 = vmax.f32 %v410, %v426
  %v443 = vmax.f32 %v411, %v427
  %v444 = vmax.f32 %v412, %v428
  %v445 = vmax.f32 %v413, %v429
  %v446 = vmax.f32 %v414, %v430
  %v447 = vmax.f32 %v415, %v431
  %v448 = vmax.f32 %v416, %v432
  %v449 = vmax.f32 %v417, %v433
  %v450 = vmax.f32 %v418, %v434
  %v451 = vmax.f32 %v419, %v435
  %v452 = vmax.f32 %v420, %v436
  %453 = vst [vmem:[#allocation2] sm:$0xff] %v437
  %454 = vst [vmem:[#allocation2 + $0x8] sm:$0xff] %v438
  %455 = vst [vmem:[#allocation2 + $0x10] sm:$0xff] %v439
  %456 = vst [vmem:[#allocation2 + $0x18] sm:$0xff] %v440
  %457 = vst [vmem:[#allocation2 + $0x20] sm:$0xff] %v441
  %458 = vst [vmem:[#allocation2 + $0x28] sm:$0xff] %v442
  %459 = vst [vmem:[#allocation2 + $0x30] sm:$0xff] %v443
  %460 = vst [vmem:[#allocation2 + $0x38] sm:$0xff] %v444
  %461 = vst [vmem:[#allocation2 + $0x40] sm:$0xff] %v445
  %462 = vst [vmem:[#allocation2 + $0x48] sm:$0xff] %v446
  %463 = vst [vmem:[#allocation2 + $0x50] sm:$0xff] %v447
  %464 = vst [vmem:[#allocation2 + $0x58] sm:$0xff] %v448
  %465 = vst [vmem:[#allocation2 + $0x60] sm:$0xff] %v449
  %466 = vst [vmem:[#allocation2 + $0x68] sm:$0xff] %v450
  %467 = vst [vmem:[#allocation2 + $0x70] sm:$0xff] %v451
  %468 = vst [vmem:[#allocation2 + $0x78] sm:$0xff] %v452
  %v469 = vld [vmem:[#allocation3] sm:$0xff]
  %v470 = vld [vmem:[#allocation3 + $0x8] sm:$0xff]
  %v471 = vld [vmem:[#allocation3 + $0x10] sm:$0xff]
  %v472 = vld [vmem:[#allocation3 + $0x18] sm:$0xff]
  %v473 = vld [vmem:[#allocation3 + $0x20] sm:$0xff]
  %v474 = vld [vmem:[#allocation3 + $0x28] sm:$0xff]
  %v475 = vld [vmem:[#allocation3 + $0x30] sm:$0xff]
  %v476 = vld [vmem:[#allocation3 + $0x38] sm:$0xff]
  %v477 = vld [vmem:[#allocation3 + $0x40] sm:$0xff]
  %v478 = vld [vmem:[#allocation3 + $0x48] sm:$0xff]
  %v479 = vld [vmem:[#allocation3 + $0x50] sm:$0xff]
  %v480 = vld [vmem:[#allocation3 + $0x58] sm:$0xff]
  %v481 = vld [vmem:[#allocation3 + $0x60] sm:$0xff]
  %v482 = vld [vmem:[#allocation3 + $0x68] sm:$0xff]
  %v483 = vld [vmem:[#allocation3 + $0x70] sm:$0xff]
  %v484 = vld [vmem:[#allocation3 + $0x78] sm:$0xff]
  %v485 = vsel %vm389, %v219, inf
  %v486 = vsel %vm390, %v222, inf
  %v487 = vsel %vm391, %v227, inf
  %v488 = vsel %vm392, %v230, inf
  %v489 = vsel %vm393, %v235, inf
  %v490 = vsel %vm394, %v238, inf
  %v491 = vsel %vm395, %v243, inf
  %v492 = vsel %vm396, %v246, inf
  %v493 = vsel %vm397, %v251, inf
  %v494 = vsel %vm398, %v254, inf
  %v495 = vsel %vm399, %v259, inf
  %v496 = vsel %vm400, %v262, inf
  %v497 = vsel %vm401, %v267, inf
  %v498 = vsel %vm402, %v270, inf
  %v499 = vsel %vm403, %v275, inf
  %v500 = vsel %vm404, %v278, inf
  %v501 = vmin.f32 %v469, %v485
  %v502 = vmin.f32 %v470, %v486
  %v503 = vmin.f32 %v471, %v487
  %v504 = vmin.f32 %v472, %v488
  %v505 = vmin.f32 %v473, %v489
  %v506 = vmin.f32 %v474, %v490
  %v507 = vmin.f32 %v475, %v491
  %v508 = vmin.f32 %v476, %v492
  %v509 = vmin.f32 %v477, %v493
  %v510 = vmin.f32 %v478, %v494
  %v511 = vmin.f32 %v479, %v495
  %v512 = vmin.f32 %v480, %v496
  %v513 = vmin.f32 %v481, %v497
  %v514 = vmin.f32 %v482, %v498
  %v515 = vmin.f32 %v483, %v499
  %v516 = vmin.f32 %v484, %v500
  %517 = vst [vmem:[#allocation3] sm:$0xff] %v501
  %518 = vst [vmem:[#allocation3 + $0x8] sm:$0xff] %v502
  %519 = vst [vmem:[#allocation3 + $0x10] sm:$0xff] %v503
  %520 = vst [vmem:[#allocation3 + $0x18] sm:$0xff] %v504
  %521 = vst [vmem:[#allocation3 + $0x20] sm:$0xff] %v505
  %522 = vst [vmem:[#allocation3 + $0x28] sm:$0xff] %v506
  %523 = vst [vmem:[#allocation3 + $0x30] sm:$0xff] %v507
  %524 = vst [vmem:[#allocation3 + $0x38] sm:$0xff] %v508
  %525 = vst [vmem:[#allocation3 + $0x40] sm:$0xff] %v509
  %526 = vst [vmem:[#allocation3 + $0x48] sm:$0xff] %v510
  %527 = vst [vmem:[#allocation3 + $0x50] sm:$0xff] %v511
  %528 = vst [vmem:[#allocation3 + $0x58] sm:$0xff] %v512
  %529 = vst [vmem:[#allocation3 + $0x60] sm:$0xff] %v513
  %530 = vst [vmem:[#allocation3 + $0x68] sm:$0xff] %v514
  %531 = vst [vmem:[#allocation3 + $0x70] sm:$0xff] %v515
  %532 = vst [vmem:[#allocation3 + $0x78] sm:$0xff] %v516
  // Predicated region
  $region22: #{tpu_custom_call.1} parent=0 // pred_check
    %p533 = pneg %p20
  $region23: #{tpu_custom_call.1} parent=0 // pred_check_branch
    %535 = sbr.rel (%p533) target = $region25
  $region24: #{tpu_custom_call.1} parent=0 // pred_region
    %v536 = vld [vmem:[#allocation2] sm:$0xff]
    %v537 = vld [vmem:[#allocation2 + $0x8] sm:$0xff]
    %v538 = vld [vmem:[#allocation2 + $0x10] sm:$0xff]
    %v539 = vld [vmem:[#allocation2 + $0x18] sm:$0xff]
    %v540 = vld [vmem:[#allocation2 + $0x20] sm:$0xff]
    %v541 = vld [vmem:[#allocation2 + $0x28] sm:$0xff]
    %v542 = vld [vmem:[#allocation2 + $0x30] sm:$0xff]
    %v543 = vld [vmem:[#allocation2 + $0x38] sm:$0xff]
    %v544 = vld [vmem:[#allocation2 + $0x40] sm:$0xff]
    %v545 = vld [vmem:[#allocation2 + $0x48] sm:$0xff]
    %v546 = vld [vmem:[#allocation2 + $0x50] sm:$0xff]
    %v547 = vld [vmem:[#allocation2 + $0x58] sm:$0xff]
    %v548 = vld [vmem:[#allocation2 + $0x60] sm:$0xff]
    %v549 = vld [vmem:[#allocation2 + $0x68] sm:$0xff]
    %v550 = vld [vmem:[#allocation2 + $0x70] sm:$0xff]
    %v551 = vld [vmem:[#allocation2 + $0x78] sm:$0xff]
    %552 = vmax.xlane.f32.xlu0 %v536
    %v553 = vpop.xlane.xlu0 %552
    %554 = vmax.xlane.f32.xlu0 %v537
    %v555 = vpop.xlane.xlu0 %554
    %556 = vmax.xlane.f32.xlu0 %v538
    %v557 = vpop.xlane.xlu0 %556
    %558 = vmax.xlane.f32.xlu0 %v539
    %v559 = vpop.xlane.xlu0 %558
    %560 = vmax.xlane.f32.xlu0 %v540
    %v561 = vpop.xlane.xlu0 %560
    %562 = vmax.xlane.f32.xlu0 %v541
    %v563 = vpop.xlane.xlu0 %562
    %564 = vmax.xlane.f32.xlu0 %v542
    %v565 = vpop.xlane.xlu0 %564
    %566 = vmax.xlane.f32.xlu0 %v543
    %v567 = vpop.xlane.xlu0 %566
    %568 = vmax.xlane.f32.xlu0 %v544
    %v569 = vpop.xlane.xlu0 %568
    %570 = vmax.xlane.f32.xlu0 %v545
    %v571 = vpop.xlane.xlu0 %570
    %572 = vmax.xlane.f32.xlu0 %v546
    %v573 = vpop.xlane.xlu0 %572
    %574 = vmax.xlane.f32.xlu0 %v547
    %v575 = vpop.xlane.xlu0 %574
    %576 = vmax.xlane.f32.xlu0 %v548
    %v577 = vpop.xlane.xlu0 %576
    %578 = vmax.xlane.f32.xlu0 %v549
    %v579 = vpop.xlane.xlu0 %578
    %580 = vmax.xlane.f32.xlu0 %v550
    %v581 = vpop.xlane.xlu0 %580
    %582 = vmax.xlane.f32.xlu0 %v551
    %v583 = vpop.xlane.xlu0 %582
    %vm584 = vcmask 7168
    %585 = vst.msk [vmem:[%s4] sm:$0xff] %vm584, %v553
    %586 = vst.msk [vmem:[%s4 + $0x8] sm:$0xff] %vm584, %v555
    %587 = vst.msk [vmem:[%s4 + $0x10] sm:$0xff] %vm584, %v557
    %588 = vst.msk [vmem:[%s4 + $0x18] sm:$0xff] %vm584, %v559
    %589 = vst.msk [vmem:[%s4 + $0x20] sm:$0xff] %vm584, %v561
    %590 = vst.msk [vmem:[%s4 + $0x28] sm:$0xff] %vm584, %v563
    %591 = vst.msk [vmem:[%s4 + $0x30] sm:$0xff] %vm584, %v565
    %592 = vst.msk [vmem:[%s4 + $0x38] sm:$0xff] %vm584, %v567
    %593 = vst.msk [vmem:[%s4 + $0x40] sm:$0xff] %vm584, %v569
    %594 = vst.msk [vmem:[%s4 + $0x48] sm:$0xff] %vm584, %v571
    %595 = vst.msk [vmem:[%s4 + $0x50] sm:$0xff] %vm584, %v573
    %596 = vst.msk [vmem:[%s4 + $0x58] sm:$0xff] %vm584, %v575
    %597 = vst.msk [vmem:[%s4 + $0x60] sm:$0xff] %vm584, %v577
    %598 = vst.msk [vmem:[%s4 + $0x68] sm:$0xff] %vm584, %v579
    %599 = vst.msk [vmem:[%s4 + $0x70] sm:$0xff] %vm584, %v581
    %600 = vst.msk [vmem:[%s4 + $0x78] sm:$0xff] %vm584, %v583
    %v601 = vld [vmem:[#allocation3] sm:$0xff]
    %v602 = vld [vmem:[#allocation3 + $0x8] sm:$0xff]
    %v603 = vld [vmem:[#allocation3 + $0x10] sm:$0xff]
    %v604 = vld [vmem:[#allocation3 + $0x18] sm:$0xff]
    %v605 = vld [vmem:[#allocation3 + $0x20] sm:$0xff]
    %v606 = vld [vmem:[#allocation3 + $0x28] sm:$0xff]
    %v607 = vld [vmem:[#allocation3 + $0x30] sm:$0xff]
    %v608 = vld [vmem:[#allocation3 + $0x38] sm:$0xff]
    %v609 = vld [vmem:[#allocation3 + $0x40] sm:$0xff]
    %v610 = vld [vmem:[#allocation3 + $0x48] sm:$0xff]
    %v611 = vld [vmem:[#allocation3 + $0x50] sm:$0xff]
    %v612 = vld [vmem:[#allocation3 + $0x58] sm:$0xff]
    %v613 = vld [vmem:[#allocation3 + $0x60] sm:$0xff]
    %v614 = vld [vmem:[#allocation3 + $0x68] sm:$0xff]
    %v615 = vld [vmem:[#allocation3 + $0x70] sm:$0xff]
    %v616 = vld [vmem:[#allocation3 + $0x78] sm:$0xff]
    %617 = vmin.xlane.f32.xlu0 %v601
    %v618 = vpop.xlane.xlu0 %617
    %619 = vmin.xlane.f32.xlu0 %v602
    %v620 = vpop.xlane.xlu0 %619
    %621 = vmin.xlane.f32.xlu0 %v603
    %v622 = vpop.xlane.xlu0 %621
    %623 = vmin.xlane.f32.xlu0 %v604
    %v624 = vpop.xlane.xlu0 %623
    %625 = vmin.xlane.f32.xlu0 %v605
    %v626 = vpop.xlane.xlu0 %625
    %627 = vmin.xlane.f32.xlu0 %v606
    %v628 = vpop.xlane.xlu0 %627
    %629 = vmin.xlane.f32.xlu0 %v607
    %v630 = vpop.xlane.xlu0 %629
    %631 = vmin.xlane.f32.xlu0 %v608
    %v632 = vpop.xlane.xlu0 %631
    %633 = vmin.xlane.f32.xlu0 %v609
    %v634 = vpop.xlane.xlu0 %633
    %635 = vmin.xlane.f32.xlu0 %v610
    %v636 = vpop.xlane.xlu0 %635
    %637 = vmin.xlane.f32.xlu0 %v611
    %v638 = vpop.xlane.xlu0 %637
    %639 = vmin.xlane.f32.xlu0 %v612
    %v640 = vpop.xlane.xlu0 %639
    %641 = vmin.xlane.f32.xlu0 %v613
    %v642 = vpop.xlane.xlu0 %641
    %643 = vmin.xlane.f32.xlu0 %v614
    %v644 = vpop.xlane.xlu0 %643
    %645 = vmin.xlane.f32.xlu0 %v615
    %v646 = vpop.xlane.xlu0 %645
    %647 = vmin.xlane.f32.xlu0 %v616
    %v648 = vpop.xlane.xlu0 %647
    %649 = vst.msk [vmem:[%s5] sm:$0xff] %vm584, %v618
    %650 = vst.msk [vmem:[%s5 + $0x8] sm:$0xff] %vm584, %v620
    %651 = vst.msk [vmem:[%s5 + $0x10] sm:$0xff] %vm584, %v622
    %652 = vst.msk [vmem:[%s5 + $0x18] sm:$0xff] %vm584, %v624
    %653 = vst.msk [vmem:[%s5 + $0x20] sm:$0xff] %vm584, %v626
    %654 = vst.msk [vmem:[%s5 + $0x28] sm:$0xff] %vm584, %v628
    %655 = vst.msk [vmem:[%s5 + $0x30] sm:$0xff] %vm584, %v630
    %656 = vst.msk [vmem:[%s5 + $0x38] sm:$0xff] %vm584, %v632
    %657 = vst.msk [vmem:[%s5 + $0x40] sm:$0xff] %vm584, %v634
    %658 = vst.msk [vmem:[%s5 + $0x48] sm:$0xff] %vm584, %v636
    %659 = vst.msk [vmem:[%s5 + $0x50] sm:$0xff] %vm584, %v638
    %660 = vst.msk [vmem:[%s5 + $0x58] sm:$0xff] %vm584, %v640
    %661 = vst.msk [vmem:[%s5 + $0x60] sm:$0xff] %vm584, %v642
    %662 = vst.msk [vmem:[%s5 + $0x68] sm:$0xff] %vm584, %v644
    %663 = vst.msk [vmem:[%s5 + $0x70] sm:$0xff] %vm584, %v646
    %664 = vst.msk [vmem:[%s5 + $0x78] sm:$0xff] %vm584, %v648
  $region25: #{tpu_custom_call.1} parent=0 // pred_fallthru
    _
  // Predicated region
  $region26: #{tpu_custom_call.1} parent=0 // pred_check
    _
  $region27: #{tpu_custom_call.1} parent=0 // pred_check_branch
    %666 = sbr.rel (0) target = $region29
  $region28: #{tpu_custom_call.1} parent=0 // pred_region
    _
  $region29: #{tpu_custom_call.1} parent=0 // pred_fallthru
    _
  // Predicated region
  $region30: #{tpu_custom_call.1} parent=0 // pred_check
    _
  $region31: #{tpu_custom_call.1} parent=0 // pred_check_branch
    %668 = sbr.rel (0) target = $region33
  $region32: #{tpu_custom_call.1} parent=0 // pred_region
    _
  $region33: #{tpu_custom_call.1} parent=0 // pred_fallthru
    _
  // Predicated region
  $region34: #{tpu_custom_call.1} parent=0 // pred_check
    _
  $region35: #{tpu_custom_call.1} parent=0 // pred_check_branch
    %670 = sbr.rel (0) target = $region37
  $region36: #{tpu_custom_call.1} parent=0 // pred_region
    _
  $region37: #{tpu_custom_call.1} parent=0 // pred_fallthru
    _
  // Predicated region
  $region38: #{tpu_custom_call.1} parent=0 // pred_check
    _
  $region39: #{tpu_custom_call.1} parent=0 // pred_check_branch
    %672 = sbr.rel (0) target = $region41
  $region40: #{tpu_custom_call.1} parent=0 // pred_region
    _
  $region41: #{tpu_custom_call.1} parent=0 // pred_fallthru
    _

</llo_original>
